<compile_context>
chip_gen: v7x
topology: tpu7x:2x2x1
jax: 0.10.0
libtpu: 0.0.40
codegen_flags: <defaults>
</compile_context>

<pallas_src>
import jax
import jax.numpy as jnp
from jax import lax
from jax.experimental import pallas as pl
from jax.experimental.pallas import tpu as pltpu


def _round_up(x: int, m: int) -> int:
    return pl.cdiv(x, m) * m


def _pad_to(x, rows, cols, dtype):
    """Zero-pad a 2-D array to (rows, cols) and cast (no copy if already sized)."""
    r, c = x.shape
    x = x.astype(dtype)
    if (r, c) == (rows, cols):
        return x
    return jnp.zeros((rows, cols), dtype).at[:r, :c].set(x)


def tied_head_kernel(x_ref, e_ref, o_ref, acc_ref):
    # x_ref:   (TM, TK) activation rows (bf16)     -- LHS tile
    # e_ref:   (TV, TK) embedding-table rows (bf16)-- RHS tile, kept "transposed"
    # o_ref:   (TM, TV) logits tile (f32), lane-dense store
    # acc_ref: (TM, TV) f32 accumulator scratch (resident across K steps)
    k = pl.program_id(2)

    @pl.when(k == 0)
    def _():
        acc_ref[...] = jnp.zeros_like(acc_ref)

    acc_ref[...] += lax.dot_general(
        x_ref[...],
        e_ref[...],
        dimension_numbers=(((1,), (1,)), ((), ())),  # contract D with D: X @ E^T
        preferred_element_type=jnp.float32,
    )

    @pl.when(k == pl.num_programs(2) - 1)
    def _():
        o_ref[...] = acc_ref[...].astype(o_ref.dtype)


def tied_lm_head_logits(x_flat, emb_table, *, tm=256, tv=512, tk=512,
                        compute_dtype=jnp.bfloat16):
    """logits = x_flat @ emb_table^T, tiled over (row, vocab, hidden) tiles."""
    M, D = x_flat.shape
    V, D2 = emb_table.shape
    assert D == D2, "hidden dims must match"

    # Clamp tiles to the (aligned) problem size: sublane dim multiple of 8,
    # lane dims multiple of 128.
    tm = min(tm, _round_up(M, 8))
    tv = min(tv, _round_up(V, 128))
    tk = min(tk, _round_up(D, 128))

    m_pad = _round_up(M, tm)
    v_pad = _round_up(V, tv)
    k_pad = _round_up(D, tk)

    x_p = _pad_to(x_flat, m_pad, k_pad, compute_dtype)     # (m_pad, k_pad)
    e_p = _pad_to(emb_table, v_pad, k_pad, compute_dtype)  # (v_pad, k_pad)

    grid = (m_pad // tm, v_pad // tv, k_pad // tk)

    # Advisory cost hint for the XLA scheduler around the custom call.
    cost = pl.CostEstimate(
        flops=2 * m_pad * v_pad * k_pad,
        transcendentals=0,
        bytes_accessed=(x_p.size + e_p.size) * 2 + m_pad * v_pad * 4,
    )

    # VMEM working set (double-buffered in/out tiles + accumulator) at default
    # tiles (256, 512, 512): ~3 MiB -> well under the scoped budget everywhere.
    logits_pad = pl.pallas_call(
        tied_head_kernel,
        out_shape=jax.ShapeDtypeStruct((m_pad, v_pad), jnp.float32),
        grid_spec=pltpu.PrefetchScalarGridSpec(
            num_scalar_prefetch=0,
            grid=grid,
            in_specs=[
                pl.BlockSpec((tm, tk), lambda i, j, k: (i, k)),  # activation rows
                pl.BlockSpec((tv, tk), lambda i, j, k: (j, k)),  # streamed vocab rows
            ],
            out_specs=pl.BlockSpec((tm, tv), lambda i, j, k: (i, j)),
            scratch_shapes=[pltpu.VMEM((tm, tv), jnp.float32)],
        ),
        compiler_params=pltpu.CompilerParams(
            dimension_semantics=("parallel", "parallel", "arbitrary"),
            vmem_limit_bytes=32 * 1024 * 1024,
        ),
        cost_estimate=cost,
    )(x_p, e_p)

    if (m_pad, v_pad) == (M, V):
        return logits_pad
    return logits_pad[:M, :V]


def soft_prompt_forward(input_ids, attention_mask, labels, soft_prompts, emb_table):
    """Mirror of SoftPromptLLM.forward (a tied-embedding logits head stands in
    for the wrapped transformer)."""
    B, S = input_ids.shape
    n_tok, D = soft_prompts.shape
    T = n_tok + S
    V = emb_table.shape[0]

    # Embedding lookup + soft-prompt prepend (XLA gather / concat).
    tok_embeds = jnp.take(emb_table, input_ids, axis=0)          # (B, S, D)
    sp = jnp.broadcast_to(soft_prompts[None], (B, n_tok, D))     # (B, n_tok, D)
    inputs_embeds = jnp.concatenate([sp, tok_embeds], axis=1)    # (B, T, D)

    # Flatten (B, T) so the MXU sees large row tiles on its M dimension.
    x_flat = inputs_embeds.reshape(B * T, D)
    logits = tied_lm_head_logits(x_flat, emb_table).reshape(B, T, V)

    # Mask / label prefixing glue, exactly as in the PyTorch forward.
    full_mask = None
    if attention_mask is not None:
        prefix_mask = jnp.ones((B, n_tok), dtype=attention_mask.dtype)
        full_mask = jnp.concatenate([prefix_mask, attention_mask], axis=1)
    full_labels = None
    if labels is not None:
        prefix_labels = jnp.full((B, n_tok), -100, dtype=labels.dtype)
        full_labels = jnp.concatenate([prefix_labels, labels], axis=1)

    # TODO(synk): the wrapped transformer (self-attention stack) itself is not
    # re-implemented here; the tied-embedding logits head stands in as the model.
    return inputs_embeds, logits, full_mask, full_labels


if __name__ == "__main__":
    B, S, n_tok, D, V = 2, 8, 8, 128, 64
    key = jax.random.PRNGKey(0)
    k_sp, k_emb, k_ids = jax.random.split(key, 3)

    soft_prompts = jax.random.normal(k_sp, (n_tok, D), dtype=jnp.float32)  # torch.randn analog
    emb_table = jax.random.normal(k_emb, (V, D), dtype=jnp.float32) * 0.02
    input_ids = jax.random.randint(k_ids, (B, S), 0, V, dtype=jnp.int32)
    attention_mask = jnp.ones((B, S), dtype=jnp.float32)
    labels = input_ids.astype(jnp.int32)

    embeds, logits, mask, labs = soft_prompt_forward(
        input_ids, attention_mask, labels, soft_prompts, emb_table
    )
    jax.block_until_ready((embeds, logits, mask, labs))

    # Pure-JAX reference (f32; kernel uses bf16 operands with f32 accumulation,
    # so allow a small tolerance on the logits).
    ref_embeds = jnp.concatenate(
        [jnp.broadcast_to(soft_prompts[None], (B, n_tok, D)), emb_table[input_ids]],
        axis=1,
    )
    ref_logits = jnp.einsum("btd,vd->btv", ref_embeds, emb_table)

    assert embeds.shape == (B, n_tok + S, D)
    assert logits.shape == (B, n_tok + S, V)
    assert jnp.allclose(embeds, ref_embeds, atol=1e-5, rtol=1e-5)
    assert jnp.max(jnp.abs(logits - ref_logits)) < 2e-2
    assert mask.shape == (B, n_tok + S) and bool(jnp.all(mask[:, :n_tok] == 1))
    assert labs.shape == (B, n_tok + S) and bool(jnp.all(labs[:, :n_tok] == -100))

    print("KERNEL_OK")
</pallas_src>

<mosaic_0001>
module attributes {stable_mosaic.version = 11 : i64} {
  func.func @tied_head_kernel(%arg0: i32, %arg1: i32, %arg2: i32, %arg3: memref<32x128xbf16, #tpu.memory_space<vmem>>, %arg4: memref<128x128xbf16, #tpu.memory_space<vmem>>, %arg5: memref<32x128xf32, #tpu.memory_space<vmem>>, %arg6: memref<32x128xf32, #tpu.memory_space<vmem>>) attributes {dimension_semantics = [#tpu.dimension_semantics<parallel>, #tpu.dimension_semantics<parallel>, #tpu.dimension_semantics<arbitrary>], iteration_bounds = array<i64: 1, 1, 1>, scalar_prefetch = 0 : i64, scratch_operands = 1 : i64, tpu.core_type = #tpu.core_type<tc>, window_params = [{transform_indices = @transform_0, window_bounds = array<i64: 32, 128>}, {transform_indices = @transform_1, window_bounds = array<i64: 128, 128>}, {transform_indices = @transform_2, window_bounds = array<i64: 32, 128>}]} {
    %c0_i32 = arith.constant 0 : i32
    %0 = arith.cmpi eq, %arg2, %c0_i32 : i32
    %1 = arith.extui %0 : i1 to i32
    %c0_i32_0 = arith.constant 0 : i32
    %2 = arith.cmpi ne, %1, %c0_i32_0 : i32
    scf.if %2 {
      %cst_10 = arith.constant 0.000000e+00 : f32
      %12 = vector.broadcast %cst_10 : f32 to vector<32x128xf32>
      %c0_11 = arith.constant 0 : index
      %c0_12 = arith.constant 0 : index
      %13 = vector.load %arg6[%c0_11, %c0_12] : memref<32x128xf32, #tpu.memory_space<vmem>>, vector<32x128xf32>
      tpu.vector_store %arg6[%c0_11, %c0_12], %12 {strides = array<i32>} : memref<32x128xf32, #tpu.memory_space<vmem>>, vector<32x128xf32>,
    } else {
    }
    %c0 = arith.constant 0 : index
    %c0_1 = arith.constant 0 : index
    %3 = vector.load %arg6[%c0, %c0_1] : memref<32x128xf32, #tpu.memory_space<vmem>>, vector<32x128xf32>
    %c0_2 = arith.constant 0 : index
    %c0_3 = arith.constant 0 : index
    %4 = vector.load %arg3[%c0_2, %c0_3] : memref<32x128xbf16, #tpu.memory_space<vmem>>, vector<32x128xbf16>
    %c0_4 = arith.constant 0 : index
    %c0_5 = arith.constant 0 : index
    %5 = vector.load %arg4[%c0_4, %c0_5] : memref<128x128xbf16, #tpu.memory_space<vmem>>, vector<128x128xbf16>
    %cst = arith.constant dense<0.000000e+00> : vector<32x128xf32>
    %6 = tpu.matmul %4, %5, %cst {dimension_numbers = #tpu.dot_dimension_numbers<[1], [1], [0], [0], [0, 0, 1, 0], [], []>} : vector<32x128xbf16>, vector<128x128xbf16>, vector<32x128xf32> -> vector<32x128xf32>
    %7 = arith.addf %3, %6 : vector<32x128xf32>
    %c0_6 = arith.constant 0 : index
    %c0_7 = arith.constant 0 : index
    %8 = vector.load %arg6[%c0_6, %c0_7] : memref<32x128xf32, #tpu.memory_space<vmem>>, vector<32x128xf32>
    tpu.vector_store %arg6[%c0_6, %c0_7], %7 {strides = array<i32>} : memref<32x128xf32, #tpu.memory_space<vmem>>, vector<32x128xf32>,
    %c0_i32_8 = arith.constant 0 : i32
    %9 = arith.cmpi eq, %arg2, %c0_i32_8 : i32
    %10 = arith.extui %9 : i1 to i32
    %c0_i32_9 = arith.constant 0 : i32
    %11 = arith.cmpi ne, %10, %c0_i32_9 : i32
    scf.if %11 {
      %c0_10 = arith.constant 0 : index
      %c0_11 = arith.constant 0 : index
      %12 = vector.load %arg6[%c0_10, %c0_11] : memref<32x128xf32, #tpu.memory_space<vmem>>, vector<32x128xf32>
      %c0_12 = arith.constant 0 : index
      %c0_13 = arith.constant 0 : index
      %13 = vector.load %arg5[%c0_12, %c0_13] : memref<32x128xf32, #tpu.memory_space<vmem>>, vector<32x128xf32>
      tpu.vector_store %arg5[%c0_12, %c0_13], %12 {strides = array<i32>} : memref<32x128xf32, #tpu.memory_space<vmem>>, vector<32x128xf32>,
    } else {
    }
    return
  }
  func.func @transform_0(%arg0: i32, %arg1: i32, %arg2: i32) -> (i32, i32) {
    %c0_i32 = arith.constant 0 : i32
    return %arg0, %arg2 : i32, i32
  }
  func.func @transform_1(%arg0: i32, %arg1: i32, %arg2: i32) -> (i32, i32) {
    %c0_i32 = arith.constant 0 : i32
    return %arg1, %arg2 : i32, i32
  }
  func.func @transform_2(%arg0: i32, %arg1: i32, %arg2: i32) -> (i32, i32) {
    %c0_i32 = arith.constant 0 : i32
    return %arg0, %arg1 : i32, i32
  }
}

</mosaic_0001>

<llo_original>
// kernel: tpu_custom_call.1
$region0: #{tpu_custom_call.1}
  #allocation0 [shape = 'u32[]', space=smem, size = 0x4, offset = 0x4, fixed_abs, tag = 'smem constant byte address 0x4 - core index']
  #allocation1 [shape = 'u32[144,128]{1,0:T(1,128)}', space=vmem, size = 0x12000, scoped, tag = 'internal scratch']
  #allocation2 [shape = 'f32[32,128]{1,0:T(8,128)}', space=vmem, size = 0x4000, scoped, tag = 'scratch operand']
  %s0 = inlined_call_operand.hbm [shape: bf16[32,128], index: 0, kind: input, shape index: {}]
  %s1 = inlined_call_operand.hbm [shape: bf16[128,128], index: 1, kind: input, shape index: {}]
  %s2 = inlined_call_operand.hbm [shape: f32[32,128], index: 2, kind: output, shape index: {}]
  %s3 = sld [smem:[#allocation0]]
  $region34: #{tpu_custom_call.1} parent=0
    _
  %s5 = ssub.s32 1, %s3
  %s6 = scalar_select 0, %s5, %s3
  $region1: #{tpu_custom_call.1} parent=0
    #allocation3 [shape = 'u8[8192]{0}', space=vmem, size = 0x2000, scoped, tag = 'input window, operand 0, single buffered']
    #allocation4 [shape = 's32[1]{0}', space=sflag, size = 0x4, scoped, tag = 'scoped memory for tpu_custom_call.1']
    #allocation5 [shape = 's32[1]{0}', space=sflag, size = 0x4, scoped, tag = 'scoped memory for tpu_custom_call.1']
    #allocation6 [shape = 'u8[32768]{0}', space=vmem, size = 0x8000, scoped, tag = 'input window, operand 1, single buffered']
    #allocation7 [shape = 's32[1]{0}', space=sflag, size = 0x4, scoped, tag = 'scoped memory for tpu_custom_call.1']
    #allocation8 [shape = 'u8[16384]{0}', space=vmem, size = 0x4000, scoped, tag = 'output window, operand 0, single buffered']
    %7 = vsyncpa [#allocation4], 0
    %8 = vsyncpa [#allocation7], 0
    %9 = vsyncpa [#allocation5], 0
    // Predicated region
    $region2: #{tpu_custom_call.1} parent=1 // pred_check
      _
    $region3: #{tpu_custom_call.1} parent=1 // pred_check_branch
      %11 = sbr.rel (0) target = $region5
    $region4: #{tpu_custom_call.1} parent=1 // pred_region
      %s13 = ssub.s32 256, 256
      %14 = vsyncadd [#allocation4], %s13
      %s15 = sshll.u32 [#allocation3], 4
      %s16 = int_to_ptr.vmem [resolvable:$true] %s15
      %21 = dma.hbm_to_vmem [thread:$0]  %s0, 256, %s16, [#allocation4], 64, 64, 4
    $region5: #{tpu_custom_call.1} parent=1 // pred_fallthru
      _
    // Predicated region
    $region6: #{tpu_custom_call.1} parent=1 // pred_check
      _
    $region7: #{tpu_custom_call.1} parent=1 // pred_check_branch
      %23 = sbr.rel (0) target = $region9
    $region8: #{tpu_custom_call.1} parent=1 // pred_region
      %s25 = ssub.s32 1024, 1024
      %26 = vsyncadd [#allocation7], %s25
      %s27 = sshll.u32 [#allocation6], 4
      %s28 = int_to_ptr.vmem [resolvable:$true] %s27
      %33 = dma.hbm_to_vmem [thread:$0]  %s1, 1024, %s28, [#allocation7], 64, 64, 4
    $region9: #{tpu_custom_call.1} parent=1 // pred_fallthru
      _
    // Predicated region
    $region10: #{tpu_custom_call.1} parent=1 // pred_check
      _
    $region11: #{tpu_custom_call.1} parent=1 // pred_check_branch
      %35 = sbr.rel (0) target = $region13
    $region12: #{tpu_custom_call.1} parent=1 // pred_region
      %36 = dma.done [#allocation4], 256
    $region13: #{tpu_custom_call.1} parent=1 // pred_fallthru
      _
    // Predicated region
    $region14: #{tpu_custom_call.1} parent=1 // pred_check
      _
    $region15: #{tpu_custom_call.1} parent=1 // pred_check_branch
      %38 = sbr.rel (0) target = $region17
    $region16: #{tpu_custom_call.1} parent=1 // pred_region
      %39 = dma.done [#allocation7], 1024
    $region17: #{tpu_custom_call.1} parent=1 // pred_fallthru
      _
    %p41 = scmp.eq.s32.totalorder 0, 0
    // Predicated region
    $region18: #{tpu_custom_call.1} parent=1 // pred_check
      %p42 = pneg %p41
    $region19: #{tpu_custom_call.1} parent=1 // pred_check_branch
      %44 = sbr.rel (%p42) target = $region21
    $region20: #{tpu_custom_call.1} parent=1 // pred_region
      %45 = vst [vmem:[#allocation2] sm:$0xff] 0.0
      %46 = vst [vmem:[#allocation2 + $0x8] sm:$0xff] 0.0
      %47 = vst [vmem:[#allocation2 + $0x10] sm:$0xff] 0.0
      %48 = vst [vmem:[#allocation2 + $0x18] sm:$0xff] 0.0
    $region21: #{tpu_custom_call.1} parent=1 // pred_fallthru
      _
    %v49 = vld [vmem:[#allocation2] sm:$0xff]
    %v50 = vld [vmem:[#allocation2 + $0x8] sm:$0xff]
    %v51 = vld [vmem:[#allocation2 + $0x10] sm:$0xff]
    %v52 = vld [vmem:[#allocation2 + $0x18] sm:$0xff]
    %v53 = vld [vmem:[#allocation3] sm:$0xf]
    %v54 = vld [vmem:[#allocation3 + $0x4] sm:$0xf]
    %v55 = vld [vmem:[#allocation3 + $0x8] sm:$0xf]
    %v56 = vld [vmem:[#allocation3 + $0xc] sm:$0xf]
    %v57 = vld [vmem:[#allocation6] sm:$0xf]
    %v58 = vld [vmem:[#allocation6 + $0x4] sm:$0xf]
    %v59 = vld [vmem:[#allocation6 + $0x8] sm:$0xf]
    %v60 = vld [vmem:[#allocation6 + $0xc] sm:$0xf]
    %v61 = vld [vmem:[#allocation6 + $0x10] sm:$0xf]
    %v62 = vld [vmem:[#allocation6 + $0x14] sm:$0xf]
    %v63 = vld [vmem:[#allocation6 + $0x18] sm:$0xf]
    %v64 = vld [vmem:[#allocation6 + $0x1c] sm:$0xf]
    %v65 = vld [vmem:[#allocation6 + $0x20] sm:$0xf]
    %v66 = vld [vmem:[#allocation6 + $0x24] sm:$0xf]
    %v67 = vld [vmem:[#allocation6 + $0x28] sm:$0xf]
    %v68 = vld [vmem:[#allocation6 + $0x2c] sm:$0xf]
    %v69 = vld [vmem:[#allocation6 + $0x30] sm:$0xf]
    %v70 = vld [vmem:[#allocation6 + $0x34] sm:$0xf]
    %v71 = vld [vmem:[#allocation6 + $0x38] sm:$0xf]
    %v72 = vld [vmem:[#allocation6 + $0x3c] sm:$0xf]
    %v77 = vunpack.c.l.b16 %v53
    %v78 = vunpack.c.l.b16 %v54
    %v79 = vunpack.c.l.b16 %v55
    %v80 = vunpack.c.l.b16 %v56
    %v81 = vpack.c.b16 %v78, %v77
    %v82 = vpack.c.b16 %v80, %v79
    %v101 = vunpack.c.l.b16 %v57
    %v102 = vunpack.c.l.b16 %v58
    %v103 = vunpack.c.l.b16 %v59
    %v104 = vunpack.c.l.b16 %v60
    %v105 = vunpack.c.l.b16 %v61
    %v106 = vunpack.c.l.b16 %v62
    %v107 = vunpack.c.l.b16 %v63
    %v108 = vunpack.c.l.b16 %v64
    %v109 = vunpack.c.l.b16 %v65
    %v110 = vunpack.c.l.b16 %v66
    %v111 = vunpack.c.l.b16 %v67
    %v112 = vunpack.c.l.b16 %v68
    %v113 = vunpack.c.l.b16 %v69
    %v114 = vunpack.c.l.b16 %v70
    %v115 = vunpack.c.l.b16 %v71
    %v116 = vunpack.c.l.b16 %v72
    %v117 = vpack.c.b16 %v102, %v101
    %v118 = vpack.c.b16 %v104, %v103
    %v119 = vpack.c.b16 %v106, %v105
    %v120 = vpack.c.b16 %v108, %v107
    %v121 = vpack.c.b16 %v110, %v109
    %v122 = vpack.c.b16 %v112, %v111
    %v123 = vpack.c.b16 %v114, %v113
    %v124 = vpack.c.b16 %v116, %v115
    %133 = vmatprep.subr.bf16.mxu0 0
    %134 = vmatpush1.bf16.xpose.msra.mxu0 %v117
    %135 = vmatprep.subr.bf16.mxu0 0
    %136 = vmatpush1.bf16.xpose.msra.mxu0 %v118
    %137 = vmatprep.subr.bf16.mxu0 0
    %138 = vmatpush1.bf16.xpose.msra.mxu0 %v119
    %139 = vmatprep.subr.bf16.mxu0 0
    %140 = vmatpush1.bf16.xpose.msra.mxu0 %v120
    %141 = vmatprep.subr.bf16.mxu0 0
    %142 = vmatpush1.bf16.xpose.msra.mxu0 %v121
    %143 = vmatprep.subr.bf16.mxu0 0
    %144 = vmatpush1.bf16.xpose.msra.mxu0 %v122
    %145 = vmatprep.subr.bf16.mxu0 0
    %146 = vmatpush1.bf16.xpose.msra.mxu0 %v123
    %147 = vmatprep.subr.bf16.mxu0 0
    %148 = vmatpush1.bf16.xpose.msra.mxu0 %v124
    %149 = vmatprep.subr.bf16.mxu0 0
    %150 = vmatpush1.bf16.xpose.msra.mxu0 0
    %151 = vmatprep.subr.bf16.mxu0 0
    %152 = vmatpush1.bf16.xpose.msra.mxu0 0
    %153 = vmatprep.subr.bf16.mxu0 0
    %154 = vmatpush1.bf16.xpose.msra.mxu0 0
    %155 = vmatprep.subr.bf16.mxu0 0
    %156 = vmatpush1.bf16.xpose.msra.mxu0 0
    %157 = vmatprep.subr.bf16.mxu0 0
    %158 = vmatpush1.bf16.xpose.msra.mxu0 0
    %159 = vmatprep.subr.bf16.mxu0 0
    %160 = vmatpush1.bf16.xpose.msra.mxu0 0
    %161 = vmatprep.subr.bf16.mxu0 0
    %162 = vmatpush1.bf16.xpose.msra.mxu0 0
    %163 = vmatprep.subr.bf16.mxu0 0
    %164 = vmatpush1.bf16.xpose.msra.mxu0 0
    %165 = vmatprep.mubr.bf16.mxu0 0
    %166 = vmatmul.mubr.bf16.gmra.mrb[0].mxu0 %v81
    %v167 = vpop.f32.mrb[0].mxu0
    %v168 = vadd.f32 0.0, %v167
    %v169 = vpop.f32.mrb[0].mxu0
    %v170 = vpop.f32.mrb[0].mxu0
    %v171 = vadd.f32 0.0, %v170
    %v172 = vpop.f32.mrb[0].mxu0
    %173 = vmatprep.mubr.bf16.mxu0 0
    %174 = vmatmul.mubr.bf16.gmra.mrb[0].mxu0 %v82
    %v175 = vpop.f32.mrb[0].mxu0
    %v176 = vadd.f32 0.0, %v175
    %v177 = vpop.f32.mrb[0].mxu0
    %v178 = vpop.f32.mrb[0].mxu0
    %v179 = vadd.f32 0.0, %v178
    %v180 = vpop.f32.mrb[0].mxu0
    %181 = vdwg.mxu0
    %v182 = vadd.f32 %v49, %v168
    %v183 = vadd.f32 %v50, %v171
    %v184 = vadd.f32 %v51, %v176
    %v185 = vadd.f32 %v52, %v179
    %186 = vst [vmem:[#allocation2] sm:$0xff] %v182
    %187 = vst [vmem:[#allocation2 + $0x8] sm:$0xff] %v183
    %188 = vst [vmem:[#allocation2 + $0x10] sm:$0xff] %v184
    %189 = vst [vmem:[#allocation2 + $0x18] sm:$0xff] %v185
    // Predicated region
    $region22: #{tpu_custom_call.1} parent=1 // pred_check
      %p190 = pneg %p41
    $region23: #{tpu_custom_call.1} parent=1 // pred_check_branch
      %192 = sbr.rel (%p190) target = $region25
    $region24: #{tpu_custom_call.1} parent=1 // pred_region
      %v193 = vld [vmem:[#allocation2] sm:$0xff]
      %v194 = vld [vmem:[#allocation2 + $0x8] sm:$0xff]
      %v195 = vld [vmem:[#allocation2 + $0x10] sm:$0xff]
      %v196 = vld [vmem:[#allocation2 + $0x18] sm:$0xff]
      %197 = vst [vmem:[#allocation8] sm:$0xff] %v193
      %198 = vst [vmem:[#allocation8 + $0x8] sm:$0xff] %v194
      %199 = vst [vmem:[#allocation8 + $0x10] sm:$0xff] %v195
      %200 = vst [vmem:[#allocation8 + $0x18] sm:$0xff] %v196
    $region25: #{tpu_custom_call.1} parent=1 // pred_fallthru
      _
    // Predicated region
    $region26: #{tpu_custom_call.1} parent=1 // pred_check
      _
    $region27: #{tpu_custom_call.1} parent=1 // pred_check_branch
      %202 = sbr.rel (0) target = $region29
    $region28: #{tpu_custom_call.1} parent=1 // pred_region
      %s204 = ssub.s32 512, 512
      %205 = vsyncadd [#allocation5], %s204
      %s206 = sshll.u32 [#allocation8], 4
      %s207 = int_to_ptr.vmem [resolvable:$true] %s206
      %212 = dma.vmem_to_hbm [thread:$0]  %s207, 512, %s2, [#allocation5], 128, 128, 8
    $region29: #{tpu_custom_call.1} parent=1 // pred_fallthru
      _
    // Predicated region
    $region30: #{tpu_custom_call.1} parent=1 // pred_check
      _
    $region31: #{tpu_custom_call.1} parent=1 // pred_check_branch
      %214 = sbr.rel (0) target = $region33
    $region32: #{tpu_custom_call.1} parent=1 // pred_region
      %215 = dma.done [#allocation5], 512
    $region33: #{tpu_custom_call.1} parent=1 // pred_fallthru
      _
    %216 = vsyncpa [#allocation4], 1
    %217 = vsyncpa [#allocation7], 1
    %218 = vsyncpa [#allocation5], 1

</llo_original>
